<compile_context>
chip_gen: v6e
topology: v6e:2x2x1
jax: 0.10.0
libtpu: 0.0.40
codegen_flags: <defaults>
</compile_context>

<pallas_src>
import jax
import jax.numpy as jnp
from jax.experimental import pallas as pl
from jax.experimental.pallas import tpu as pltpu


def card2vec_kernel(tgt_ref, table_ref, w_ref, b_ref, out_ref):
    # tgt_ref:   (TB, 1)  int32    -- card indices for this batch tile
    # table_ref: (Vp, Dp) bfloat16 -- embedding table (zero-padded, VMEM resident)
    # w_ref:     (Dp, Vp) bfloat16 -- Linear weight pre-transposed (zero-padded)
    # b_ref:     (1, Vp)  float32  -- Linear bias (padded columns = -1e30 -> softmax ignores)
    # out_ref:   (TB, Vp) float32  -- softmax probabilities
    tgt = tgt_ref[...]                                       # (TB, 1)
    tb = tgt.shape[0]
    vp = table_ref.shape[0]

    # nn.Embedding lookup == one_hot(target) @ table (exact row gather on the MXU).
    # Note: out-of-range indices give an all-zero row instead of raising like nn.Embedding;
    # inputs are assumed valid.
    iota = jax.lax.broadcasted_iota(jnp.int32, (tb, vp), 1)
    onehot = (iota == tgt).astype(jnp.bfloat16)              # (TB, Vp), exact 0/1 in bf16
    emb = jnp.dot(onehot, table_ref[...],
                  preferred_element_type=jnp.float32)        # (TB, Dp)

    # nn.Linear: x @ W^T + b  (bf16 operands, f32 accumulation; emb rows are exact bf16
    # table rows, so the cast back to bf16 is lossless).
    logits = jnp.dot(emb.astype(jnp.bfloat16), w_ref[...],
                     preferred_element_type=jnp.float32) + b_ref[...]   # (TB, Vp)

    # Numerically stable softmax over the vocab axis; divide goes to the EUP.
    m = jnp.max(logits, axis=-1, keepdims=True)
    e = jnp.exp(logits - m)
    denom = jnp.sum(e, axis=-1, keepdims=True)
    out_ref[...] = (e * pl.reciprocal(denom, approx=True)).astype(out_ref.dtype)


def _round_up(x, m):
    return (x + m - 1) // m * m


def card2vec_forward(targets, emb_table, linear_w, linear_b, *, tile_b=128):
    """targets: (B,) int; emb_table: (V, D); linear_w: (V, D); linear_b: (V,). Returns (B, V) f32."""
    B = targets.shape[0]
    V, D = emb_table.shape

    # ---- pad to TPU-friendly shapes (lane-dense, MXU-aligned) --------------------------------
    Vp = _round_up(V, 128)
    Dp = _round_up(D, 128)
    tb = _round_up(min(tile_b, _round_up(B, 8)), 8)
    Bp = _round_up(B, tb)

    tgt_p = jnp.zeros((Bp, 1), jnp.int32).at[:B, 0].set(targets.astype(jnp.int32))
    table_p = jnp.zeros((Vp, Dp), jnp.bfloat16).at[:V, :D].set(emb_table.astype(jnp.bfloat16))
    w_t_p = jnp.zeros((Dp, Vp), jnp.bfloat16).at[:D, :V].set(
        jnp.transpose(linear_w).astype(jnp.bfloat16))
    bias_p = jnp.full((1, Vp), -1e30, jnp.float32).at[0, :V].set(linear_b.astype(jnp.float32))

    grid = (Bp // tb,)

    # VMEM budget: resident bf16 weights + double-buffered targets/output blocks,
    # clamped well under v7x's 64 MiB physical VMEM.
    bytes_needed = (Vp * Dp * 2 + Dp * Vp * 2 + Vp * 4          # resident weights/bias
                    + 2 * (tb * 4 + tb * Vp * 4))               # streamed blocks (2-deep)
    vmem_limit = int(min(max(2 * bytes_needed, 32 * 1024 * 1024), 48 * 1024 * 1024))

    out_p = pl.pallas_call(
        card2vec_kernel,
        out_shape=jax.ShapeDtypeStruct((Bp, Vp), jnp.float32),
        grid_spec=pltpu.PrefetchScalarGridSpec(
            num_scalar_prefetch=0,
            grid=grid,
            in_specs=[
                pl.BlockSpec((tb, 1), lambda i: (i, 0)),      # targets tile
                pl.BlockSpec((Vp, Dp), lambda i: (0, 0)),     # full embedding table (bf16)
                pl.BlockSpec((Dp, Vp), lambda i: (0, 0)),     # full W^T (bf16)
                pl.BlockSpec((1, Vp), lambda i: (0, 0)),      # bias
            ],
            out_specs=pl.BlockSpec((tb, Vp), lambda i: (i, 0)),
        ),
        compiler_params=pltpu.CompilerParams(
            dimension_semantics=("parallel",),
            vmem_limit_bytes=vmem_limit,
        ),
    )(tgt_p, table_p, w_t_p, bias_p)

    return out_p[:B, :V]


def card2vec_reference(targets, emb_table, linear_w, linear_b):
    emb = emb_table[targets]                                  # (B, D)
    logits = emb @ linear_w.T + linear_b                      # (B, V)
    return jax.nn.softmax(logits, axis=1)


if __name__ == "__main__":
    # Small, module-consistent shapes: set_size (vocab) = 32, embedding_dim = 16, batch = 8.
    set_size = 32
    embedding_dim = 16
    batch = 8

    key = jax.random.PRNGKey(0)
    k_tab, k_w, k_b, k_tgt = jax.random.split(key, 4)

    emb_table = jax.random.normal(k_tab, (set_size, embedding_dim), dtype=jnp.float32)
    linear_w = jax.random.normal(k_w, (set_size, embedding_dim), dtype=jnp.float32) * 0.1
    linear_b = jax.random.normal(k_b, (set_size,), dtype=jnp.float32) * 0.1

    targets = jax.random.randint(k_tgt, (batch,), 0, set_size, dtype=jnp.int32)

    out = card2vec_forward(targets, emb_table, linear_w, linear_b)
    out = jax.block_until_ready(out)

    ref = card2vec_reference(targets, emb_table, linear_w, linear_b)
    assert out.shape == (batch, set_size)
    # bf16 weights + approx reciprocal -> relaxed tolerances vs the f32 reference.
    assert jnp.allclose(out, ref, atol=2e-2, rtol=2e-2), "mismatch vs pure-JAX reference"
    assert jnp.allclose(jnp.sum(out, axis=1), 1.0, atol=5e-3), "rows must sum to ~1"

    print("KERNEL_OK")
</pallas_src>

<mosaic_0001>
module attributes {stable_mosaic.version = 11 : i64} {
  func.func @card2vec_kernel(%arg0: i32, %arg1: memref<8x1xi32, #tpu.memory_space<vmem>>, %arg2: memref<128x128xbf16, #tpu.memory_space<vmem>>, %arg3: memref<128x128xbf16, #tpu.memory_space<vmem>>, %arg4: memref<1x128xf32, #tpu.memory_space<vmem>>, %arg5: memref<8x128xf32, #tpu.memory_space<vmem>>) attributes {dimension_semantics = [#tpu.dimension_semantics<parallel>], iteration_bounds = array<i64: 1>, scalar_prefetch = 0 : i64, scratch_operands = 0 : i64, tpu.core_type = #tpu.core_type<tc>, window_params = [{transform_indices = @transform_0, window_bounds = array<i64: 8, 1>}, {pipeline_mode = #tpu.pipeline_mode<synchronous>, transform_indices = @transform_1, window_bounds = array<i64: 128, 128>}, {pipeline_mode = #tpu.pipeline_mode<synchronous>, transform_indices = @transform_2, window_bounds = array<i64: 128, 128>}, {pipeline_mode = #tpu.pipeline_mode<synchronous>, transform_indices = @transform_3, window_bounds = array<i64: 1, 128>}, {transform_indices = @transform_4, window_bounds = array<i64: 8, 128>}]} {
    %c0 = arith.constant 0 : index
    %c0_0 = arith.constant 0 : index
    %0 = vector.load %arg1[%c0, %c0_0] : memref<8x1xi32, #tpu.memory_space<vmem>>, vector<8x1xi32>
    %1 = tpu.iota {dimensions = array<i32: 1>} : vector<8x128xi32>
    %2 = vector.broadcast %0 : vector<8x1xi32> to vector<8x128xi32>
    %3 = arith.cmpi eq, %1, %2 : vector<8x128xi32>
    %4 = arith.extui %3 : vector<8x128xi1> to vector<8x128xi32>
    %5 = arith.sitofp %4 : vector<8x128xi32> to vector<8x128xf32>
    %6 = arith.truncf %5 : vector<8x128xf32> to vector<8x128xbf16>
    %c0_1 = arith.constant 0 : index
    %c0_2 = arith.constant 0 : index
    %7 = vector.load %arg2[%c0_1, %c0_2] : memref<128x128xbf16, #tpu.memory_space<vmem>>, vector<128x128xbf16>
    %cst = arith.constant dense<0.000000e+00> : vector<8x128xf32>
    %8 = tpu.matmul %6, %7, %cst {dimension_numbers = #tpu.dot_dimension_numbers<[1], [0], [0], [1], [0, 0, 1, 1], [], []>} : vector<8x128xbf16>, vector<128x128xbf16>, vector<8x128xf32> -> vector<8x128xf32>
    %9 = arith.truncf %8 : vector<8x128xf32> to vector<8x128xbf16>
    %c0_3 = arith.constant 0 : index
    %c0_4 = arith.constant 0 : index
    %10 = vector.load %arg3[%c0_3, %c0_4] : memref<128x128xbf16, #tpu.memory_space<vmem>>, vector<128x128xbf16>
    %cst_5 = arith.constant dense<0.000000e+00> : vector<8x128xf32>
    %11 = tpu.matmul %9, %10, %cst_5 {dimension_numbers = #tpu.dot_dimension_numbers<[1], [0], [0], [1], [0, 0, 1, 1], [], []>} : vector<8x128xbf16>, vector<128x128xbf16>, vector<8x128xf32> -> vector<8x128xf32>
    %c0_6 = arith.constant 0 : index
    %c0_7 = arith.constant 0 : index
    %12 = vector.load %arg4[%c0_6, %c0_7] : memref<1x128xf32, #tpu.memory_space<vmem>>, vector<1x128xf32>
    %13 = vector.broadcast %12 : vector<1x128xf32> to vector<8x128xf32>
    %14 = arith.addf %11, %13 : vector<8x128xf32>
    %cst_8 = arith.constant dense<0xFF800000> : vector<8xf32>
    %15 = vector.multi_reduction <maximumf>, %14, %cst_8 [1] : vector<8x128xf32> to vector<8xf32>
    %16 = vector.shape_cast %15 : vector<8xf32> to vector<8x1xf32>
    %17 = vector.broadcast %16 : vector<8x1xf32> to vector<8x128xf32>
    %18 = arith.subf %14, %17 : vector<8x128xf32>
    %19 = math.exp %18 : vector<8x128xf32>
    %cst_9 = arith.constant dense<0.000000e+00> : vector<8xf32>
    %20 = vector.multi_reduction <add>, %19, %cst_9 [1] : vector<8x128xf32> to vector<8xf32>
    %21 = vector.shape_cast %20 : vector<8xf32> to vector<8x1xf32>
    %22 = tpu.reciprocal %21 {approx = true} : vector<8x1xf32> -> vector<8x1xf32>
    %23 = vector.broadcast %22 : vector<8x1xf32> to vector<8x128xf32>
    %24 = arith.mulf %19, %23 : vector<8x128xf32>
    %c0_10 = arith.constant 0 : index
    %c0_11 = arith.constant 0 : index
    %25 = vector.load %arg5[%c0_10, %c0_11] : memref<8x128xf32, #tpu.memory_space<vmem>>, vector<8x128xf32>
    tpu.vector_store %arg5[%c0_10, %c0_11], %24 {strides = array<i32>} : memref<8x128xf32, #tpu.memory_space<vmem>>, vector<8x128xf32>,
    return
  }
  func.func @transform_0(%arg0: i32) -> (i32, i32) {
    %c0_i32 = arith.constant 0 : i32
    %c0_i32_0 = arith.constant 0 : i32
    return %arg0, %c0_i32 : i32, i32
  }
  func.func @transform_1(%arg0: i32) -> (i32, i32) {
    %c0_i32 = arith.constant 0 : i32
    %c0_i32_0 = arith.constant 0 : i32
    %c0_i32_1 = arith.constant 0 : i32
    return %c0_i32, %c0_i32_0 : i32, i32
  }
  func.func @transform_2(%arg0: i32) -> (i32, i32) {
    %c0_i32 = arith.constant 0 : i32
    %c0_i32_0 = arith.constant 0 : i32
    %c0_i32_1 = arith.constant 0 : i32
    return %c0_i32, %c0_i32_0 : i32, i32
  }
  func.func @transform_3(%arg0: i32) -> (i32, i32) {
    %c0_i32 = arith.constant 0 : i32
    %c0_i32_0 = arith.constant 0 : i32
    %c0_i32_1 = arith.constant 0 : i32
    return %c0_i32, %c0_i32_0 : i32, i32
  }
  func.func @transform_4(%arg0: i32) -> (i32, i32) {
    %c0_i32 = arith.constant 0 : i32
    %c0_i32_0 = arith.constant 0 : i32
    return %arg0, %c0_i32 : i32, i32
  }
}

</mosaic_0001>

<llo_original>
// kernel: tpu_custom_call.1
$region0: #{tpu_custom_call.1}
  #allocation0 [shape = 'u32[]', space=smem, size = 0x4, offset = 0x4, fixed_abs, tag = 'smem constant byte address 0x4 - core index']
  #allocation1 [shape = 'u32[144,128]{1,0:T(1,128)}', space=vmem, size = 0x12000, scoped, tag = 'internal scratch']
  %s0 = inlined_call_operand.vmem [shape: s32[8,1], index: 0, kind: input, shape index: {}]
  %s1 = inlined_call_operand.hbm [shape: bf16[128,128], index: 1, kind: input, shape index: {}]
  %s2 = inlined_call_operand.hbm [shape: bf16[128,128], index: 2, kind: input, shape index: {}]
  %s3 = inlined_call_operand.vmem [shape: f32[1,128], index: 3, kind: input, shape index: {}]
  %s4 = inlined_call_operand.hbm [shape: f32[8,128], index: 4, kind: output, shape index: {}]
  %s5 = sld [smem:[#allocation0]]
  $region34: #{tpu_custom_call.1} parent=0
    _
  %s7 = ssub.s32 1, %s5
  %s8 = scalar_select 0, %s7, %s5
  $region1: #{tpu_custom_call.1} parent=0
    #allocation2 [shape = 'u8[32768]{0}', space=vmem, size = 0x8000, scoped, tag = 'input window, operand 1, single buffered']
    #allocation3 [shape = 's32[1]{0}', space=sflag, size = 0x4, scoped, tag = 'scoped memory for tpu_custom_call.1']
    #allocation4 [shape = 's32[1]{0}', space=sflag, size = 0x4, scoped, tag = 'scoped memory for tpu_custom_call.1']
    #allocation5 [shape = 'u8[32768]{0}', space=vmem, size = 0x8000, scoped, tag = 'input window, operand 2, single buffered']
    #allocation6 [shape = 's32[1]{0}', space=sflag, size = 0x4, scoped, tag = 'scoped memory for tpu_custom_call.1']
    #allocation7 [shape = 'u8[4096]{0}', space=vmem, size = 0x1000, scoped, tag = 'output window, operand 0, single buffered']
    %9 = vsyncpa [#allocation3], 0
    %10 = vsyncpa [#allocation6], 0
    %11 = vsyncpa [#allocation4], 0
    // Predicated region
    $region2: #{tpu_custom_call.1} parent=1 // pred_check
      _
    $region3: #{tpu_custom_call.1} parent=1 // pred_check_branch
      %13 = sbr.rel (0) target = $region5
    $region4: #{tpu_custom_call.1} parent=1 // pred_region
      _
    $region5: #{tpu_custom_call.1} parent=1 // pred_fallthru
      _
    // Predicated region
    $region6: #{tpu_custom_call.1} parent=1 // pred_check
      _
    $region7: #{tpu_custom_call.1} parent=1 // pred_check_branch
      %15 = sbr.rel (0) target = $region9
    $region8: #{tpu_custom_call.1} parent=1 // pred_region
      %s17 = ssub.s32 1024, 1024
      %18 = vsyncadd [#allocation3], %s17
      %s19 = sshll.u32 [#allocation2], 4
      %s20 = int_to_ptr.vmem [resolvable:$true] %s19
      %25 = dma.hbm_to_vmem [thread:$0]  %s1, 1024, %s20, [#allocation3], 64, 64, 4
    $region9: #{tpu_custom_call.1} parent=1 // pred_fallthru
      _
    // Predicated region
    $region10: #{tpu_custom_call.1} parent=1 // pred_check
      _
    $region11: #{tpu_custom_call.1} parent=1 // pred_check_branch
      %27 = sbr.rel (0) target = $region13
    $region12: #{tpu_custom_call.1} parent=1 // pred_region
      %s29 = ssub.s32 1024, 1024
      %30 = vsyncadd [#allocation6], %s29
      %s31 = sshll.u32 [#allocation5], 4
      %s32 = int_to_ptr.vmem [resolvable:$true] %s31
      %37 = dma.hbm_to_vmem [thread:$0]  %s2, 1024, %s32, [#allocation6], 64, 64, 4
    $region13: #{tpu_custom_call.1} parent=1 // pred_fallthru
      _
    // Predicated region
    $region14: #{tpu_custom_call.1} parent=1 // pred_check
      _
    $region15: #{tpu_custom_call.1} parent=1 // pred_check_branch
      %39 = sbr.rel (0) target = $region17
    $region16: #{tpu_custom_call.1} parent=1 // pred_region
      _
    $region17: #{tpu_custom_call.1} parent=1 // pred_fallthru
      _
    // Predicated region
    $region18: #{tpu_custom_call.1} parent=1 // pred_check
      _
    $region19: #{tpu_custom_call.1} parent=1 // pred_check_branch
      %41 = sbr.rel (0) target = $region21
    $region20: #{tpu_custom_call.1} parent=1 // pred_region
      %42 = dma.done [#allocation3], 1024
    $region21: #{tpu_custom_call.1} parent=1 // pred_fallthru
      _
    // Predicated region
    $region22: #{tpu_custom_call.1} parent=1 // pred_check
      _
    $region23: #{tpu_custom_call.1} parent=1 // pred_check_branch
      %44 = sbr.rel (0) target = $region25
    $region24: #{tpu_custom_call.1} parent=1 // pred_region
      %45 = dma.done [#allocation6], 1024
    $region25: #{tpu_custom_call.1} parent=1 // pred_fallthru
      _
    %v47 = vld [vmem:[%s0] sm:$0xff]
    %v48 = vlaneseq
    %v49 = vand.u32 %v48, 127
    %50 = vset.pattern.permute.xlu0 0
    %51 = vperm.xlu0 %50, %v47
    %v52 = vpop.permute.xlu0 %51
    %vm53 = vcmp.eq.s32.totalorder %v49, %v52
    %v54 = vsel %vm53, 1, 0
    %v55 = vcvt.s32.f32 %v54
    %v56 = vpack.c.bf16 %v55, %v55
    %v57 = vld [vmem:[#allocation2] sm:$0xf]
    %v58 = vld [vmem:[#allocation2 + $0x4] sm:$0xf]
    %v59 = vld [vmem:[#allocation2 + $0x8] sm:$0xf]
    %v60 = vld [vmem:[#allocation2 + $0xc] sm:$0xf]
    %v61 = vld [vmem:[#allocation2 + $0x10] sm:$0xf]
    %v62 = vld [vmem:[#allocation2 + $0x14] sm:$0xf]
    %v63 = vld [vmem:[#allocation2 + $0x18] sm:$0xf]
    %v64 = vld [vmem:[#allocation2 + $0x1c] sm:$0xf]
    %v65 = vld [vmem:[#allocation2 + $0x20] sm:$0xf]
    %v66 = vld [vmem:[#allocation2 + $0x24] sm:$0xf]
    %v67 = vld [vmem:[#allocation2 + $0x28] sm:$0xf]
    %v68 = vld [vmem:[#allocation2 + $0x2c] sm:$0xf]
    %v69 = vld [vmem:[#allocation2 + $0x30] sm:$0xf]
    %v70 = vld [vmem:[#allocation2 + $0x34] sm:$0xf]
    %v71 = vld [vmem:[#allocation2 + $0x38] sm:$0xf]
    %v72 = vld [vmem:[#allocation2 + $0x3c] sm:$0xf]
    %v89 = vunpack.c.l.b16 %v57
    %v90 = vunpack.c.l.b16 %v58
    %v91 = vunpack.c.l.b16 %v59
    %v92 = vunpack.c.l.b16 %v60
    %v93 = vunpack.c.l.b16 %v61
    %v94 = vunpack.c.l.b16 %v62
    %v95 = vunpack.c.l.b16 %v63
    %v96 = vunpack.c.l.b16 %v64
    %v97 = vunpack.c.l.b16 %v65
    %v98 = vunpack.c.l.b16 %v66
    %v99 = vunpack.c.l.b16 %v67
    %v100 = vunpack.c.l.b16 %v68
    %v101 = vunpack.c.l.b16 %v69
    %v102 = vunpack.c.l.b16 %v70
    %v103 = vunpack.c.l.b16 %v71
    %v104 = vunpack.c.l.b16 %v72
    %v105 = vpack.c.b16 %v90, %v89
    %v106 = vpack.c.b16 %v92, %v91
    %v107 = vpack.c.b16 %v94, %v93
    %v108 = vpack.c.b16 %v96, %v95
    %v109 = vpack.c.b16 %v98, %v97
    %v110 = vpack.c.b16 %v100, %v99
    %v111 = vpack.c.b16 %v102, %v101
    %v112 = vpack.c.b16 %v104, %v103
    %121 = vmatprep.subr.bf16.mxu0 0
    %122 = vmatpush1.bf16.msra.mxu0 %v112
    %123 = vmatprep.subr.bf16.mxu0 0
    %124 = vmatpush1.bf16.msra.mxu0 %v111
    %125 = vmatprep.subr.bf16.mxu0 0
    %126 = vmatpush1.bf16.msra.mxu0 %v110
    %127 = vmatprep.subr.bf16.mxu0 0
    %128 = vmatpush1.bf16.msra.mxu0 %v109
    %129 = vmatprep.subr.bf16.mxu0 0
    %130 = vmatpush1.bf16.msra.mxu0 %v108
    %131 = vmatprep.subr.bf16.mxu0 0
    %132 = vmatpush1.bf16.msra.mxu0 %v107
    %133 = vmatprep.subr.bf16.mxu0 0
    %134 = vmatpush1.bf16.msra.mxu0 %v106
    %135 = vmatprep.subr.bf16.mxu0 0
    %136 = vmatpush1.bf16.msra.mxu0 %v105
    %137 = vmatprep.subr.bf16.mxu0 0
    %138 = vmatpush2.bf16.msra.mxu0 0
    %139 = vmatprep.subr.bf16.mxu0 0
    %140 = vmatpush2.bf16.msra.mxu0 0
    %141 = vmatprep.subr.bf16.mxu0 0
    %142 = vmatpush2.bf16.msra.mxu0 0
    %143 = vmatprep.subr.bf16.mxu0 0
    %144 = vmatpush2.bf16.msra.mxu0 0
    %145 = vmatprep.subr.bf16.mxu0 0
    %146 = vmatpush2.bf16.msra.mxu0 0
    %147 = vmatprep.subr.bf16.mxu0 0
    %148 = vmatpush2.bf16.msra.mxu0 0
    %149 = vmatprep.subr.bf16.mxu0 0
    %150 = vmatpush2.bf16.msra.mxu0 0
    %151 = vmatprep.subr.bf16.mxu0 0
    %152 = vmatpush2.bf16.msra.mxu0 0
    %153 = vmatprep.mubr.bf16.mxu0 0
    %154 = vmatmul.mubr.bf16.gmra.mxu0 %v56
    %v155 = vpop.f32.mrf.mxu0
    %v156 = vadd.f32 0.0, %v155
    %v157 = vpop.f32.mrf.mxu0
    %v158 = vpop.f32.mrf.mxu0
    %v159 = vpop.f32.mrf.mxu0
    %160 = vdwg.mxu0
    %v161 = vpack.c.bf16 %v156, %v156
    %v162 = vld [vmem:[#allocation5] sm:$0xf]
    %v163 = vld [vmem:[#allocation5 + $0x4] sm:$0xf]
    %v164 = vld [vmem:[#allocation5 + $0x8] sm:$0xf]
    %v165 = vld [vmem:[#allocation5 + $0xc] sm:$0xf]
    %v166 = vld [vmem:[#allocation5 + $0x10] sm:$0xf]
    %v167 = vld [vmem:[#allocation5 + $0x14] sm:$0xf]
    %v168 = vld [vmem:[#allocation5 + $0x18] sm:$0xf]
    %v169 = vld [vmem:[#allocation5 + $0x1c] sm:$0xf]
    %v170 = vld [vmem:[#allocation5 + $0x20] sm:$0xf]
    %v171 = vld [vmem:[#allocation5 + $0x24] sm:$0xf]
    %v172 = vld [vmem:[#allocation5 + $0x28] sm:$0xf]
    %v173 = vld [vmem:[#allocation5 + $0x2c] sm:$0xf]
    %v174 = vld [vmem:[#allocation5 + $0x30] sm:$0xf]
    %v175 = vld [vmem:[#allocation5 + $0x34] sm:$0xf]
    %v176 = vld [vmem:[#allocation5 + $0x38] sm:$0xf]
    %v177 = vld [vmem:[#allocation5 + $0x3c] sm:$0xf]
    %v178 = vld [vmem:[%s3] sm:$0x1]
    %v180 = vlaneseq
    %v181 = vshrl.u32 %v180, 7
    %v182 = vsub.s32 0, %v181
    %v183 = vrot.slane %v178, %v182
    %v201 = vunpack.c.l.b16 %v162
    %v202 = vunpack.c.l.b16 %v163
    %v203 = vunpack.c.l.b16 %v164
    %v204 = vunpack.c.l.b16 %v165
    %v205 = vunpack.c.l.b16 %v166
    %v206 = vunpack.c.l.b16 %v167
    %v207 = vunpack.c.l.b16 %v168
    %v208 = vunpack.c.l.b16 %v169
    %v209 = vunpack.c.l.b16 %v170
    %v210 = vunpack.c.l.b16 %v171
    %v211 = vunpack.c.l.b16 %v172
    %v212 = vunpack.c.l.b16 %v173
    %v213 = vunpack.c.l.b16 %v174
    %v214 = vunpack.c.l.b16 %v175
    %v215 = vunpack.c.l.b16 %v176
    %v216 = vunpack.c.l.b16 %v177
    %v217 = vpack.c.b16 %v202, %v201
    %v218 = vpack.c.b16 %v204, %v203
    %v219 = vpack.c.b16 %v206, %v205
    %v220 = vpack.c.b16 %v208, %v207
    %v221 = vpack.c.b16 %v210, %v209
    %v222 = vpack.c.b16 %v212, %v211
    %v223 = vpack.c.b16 %v214, %v213
    %v224 = vpack.c.b16 %v216, %v215
    %233 = vmatprep.subr.bf16.mxu0 0
    %234 = vmatpush1.bf16.msra.mxu0 %v224
    %235 = vmatprep.subr.bf16.mxu0 0
    %236 = vmatpush1.bf16.msra.mxu0 %v223
    %237 = vmatprep.subr.bf16.mxu0 0
    %238 = vmatpush1.bf16.msra.mxu0 %v222
    %239 = vmatprep.subr.bf16.mxu0 0
    %240 = vmatpush1.bf16.msra.mxu0 %v221
    %241 = vmatprep.subr.bf16.mxu0 0
    %242 = vmatpush1.bf16.msra.mxu0 %v220
    %243 = vmatprep.subr.bf16.mxu0 0
    %244 = vmatpush1.bf16.msra.mxu0 %v219
    %245 = vmatprep.subr.bf16.mxu0 0
    %246 = vmatpush1.bf16.msra.mxu0 %v218
    %247 = vmatprep.subr.bf16.mxu0 0
    %248 = vmatpush1.bf16.msra.mxu0 %v217
    %249 = vmatprep.subr.bf16.mxu0 0
    %250 = vmatpush2.bf16.msra.mxu0 0
    %251 = vmatprep.subr.bf16.mxu0 0
    %252 = vmatpush2.bf16.msra.mxu0 0
    %253 = vmatprep.subr.bf16.mxu0 0
    %254 = vmatpush2.bf16.msra.mxu0 0
    %255 = vmatprep.subr.bf16.mxu0 0
    %256 = vmatpush2.bf16.msra.mxu0 0
    %257 = vmatprep.subr.bf16.mxu0 0
    %258 = vmatpush2.bf16.msra.mxu0 0
    %259 = vmatprep.subr.bf16.mxu0 0
    %260 = vmatpush2.bf16.msra.mxu0 0
    %261 = vmatprep.subr.bf16.mxu0 0
    %262 = vmatpush2.bf16.msra.mxu0 0
    %263 = vmatprep.subr.bf16.mxu0 0
    %264 = vmatpush2.bf16.msra.mxu0 0
    %265 = vmatprep.mubr.bf16.mxu0 0
    %266 = vmatmul.mubr.bf16.gmra.mxu0 %v161
    %v267 = vpop.f32.mrf.mxu0
    %v268 = vadd.f32 %v183, %v267
    %v269 = vpop.f32.mrf.mxu0
    %v270 = vpop.f32.mrf.mxu0
    %v271 = vpop.f32.mrf.mxu0
    %272 = vdwg.mxu0
    %273 = vmax.xlane.f32.xlu0 %v268
    %v274 = vpop.xlane.xlu0 %273
    %v275 = vsub.f32 %v268, %v274
    %v276 = vmul.f32 %v275, 1.442695
    %v277 = vpow.pop %v276
    %278 = vadd.xlane.f32.xlu0 %v277
    %v279 = vpop.xlane.xlu0 %278
    %v280 = vrcp.pop %v279
    %v281 = vmul.f32 %v277, %v280
    %282 = vst [vmem:[#allocation7] sm:$0xff] %v281
    // Predicated region
    $region26: #{tpu_custom_call.1} parent=1 // pred_check
      _
    $region27: #{tpu_custom_call.1} parent=1 // pred_check_branch
      %284 = sbr.rel (0) target = $region29
    $region28: #{tpu_custom_call.1} parent=1 // pred_region
      %s286 = ssub.s32 128, 128
      %287 = vsyncadd [#allocation4], %s286
      %s289 = sshll.u32 [#allocation7], 4
      %s290 = int_to_ptr.vmem [resolvable:$true] %s289
      %292 = dma.vmem_to_hbm [thread:$0]  %s290, 128, %s4, [#allocation4]
    $region29: #{tpu_custom_call.1} parent=1 // pred_fallthru
      _
    // Predicated region
    $region30: #{tpu_custom_call.1} parent=1 // pred_check
      _
    $region31: #{tpu_custom_call.1} parent=1 // pred_check_branch
      %294 = sbr.rel (0) target = $region33
    $region32: #{tpu_custom_call.1} parent=1 // pred_region
      %295 = dma.done [#allocation4], 128
    $region33: #{tpu_custom_call.1} parent=1 // pred_fallthru
      _
    %296 = vsyncpa [#allocation3], 1
    %297 = vsyncpa [#allocation6], 1
    %298 = vsyncpa [#allocation4], 1

</llo_original>
